<compile_context>
chip_gen: v6e
topology: v6e:2x2x1
jax: 0.10.0
libtpu: 0.0.40
codegen_flags: <defaults>
</compile_context>

<pallas_src>
import functools

import jax
import jax.numpy as jnp
from jax import lax
from jax.experimental import pallas as pl
from jax.experimental.pallas import tpu as pltpu


def multitask_loss_kernel(anchor_ref, feat_t_ref, lab_ref, sup_logits_ref,
                          class_consts_ref, out_ref, *,
                          inv_temperature, con_scale, inv_batch):
    B = anchor_ref.shape[0]
    N = feat_t_ref.shape[1]
    C = sup_logits_ref.shape[1]

    # ---- supervised-contrastive branch -----------------------------------
    # bf16 operands feed the MXU as (B, D) x (D, N); f32 accumulation, then
    # 1/temperature applied to the f32 accumulator (more accurate than folding
    # the scale into the bf16 mantissa).
    adc = lax.dot_general(anchor_ref[...], feat_t_ref[...],
                          (((1,), (0,)), ((), ())),
                          preferred_element_type=jnp.float32)       # (B, N) f32
    adc = adc * inv_temperature

    lab = lab_ref[...]                                              # (B+1, P) i32
    lab_anchor_n = lab[:B, :N]                                      # (B, N), row i == labels[i]
    lab_row = lab[B:B + 1, :N]                                      # (1, N) full label row
    lab_anchor_c = lab[:B, :C]                                      # (B, C)

    # Diagonal (self-contrast) predicate built once and reused.
    row_ids = lax.broadcasted_iota(jnp.int32, (B, N), 0)
    col_ids = lax.broadcasted_iota(jnp.int32, (B, N), 1)
    not_diag = row_ids != col_ids                                   # (B, N) bool
    pos = jnp.logical_and(lab_anchor_n == lab_row, not_diag)        # (B, N) bool

    lmax = jnp.max(adc, axis=1, keepdims=True)                      # (B, 1)
    logits = adc - lmax
    exp_logits = jnp.where(not_diag, jnp.exp(logits), 0.0)
    log_prob = logits - jnp.log(exp_logits.sum(axis=1, keepdims=True) + 1e-12)

    # Fuse the two (B, N) lane-reductions into one (2B, N) sublane-stacked sum.
    stacked_con = jnp.concatenate(
        [jnp.where(pos, log_prob, 0.0), jnp.where(pos, 1.0, 0.0)], axis=0)
    sums_con = stacked_con.sum(axis=1, keepdims=True)               # (2B, 1)
    num_pos = sums_con[:B]
    # Clamp so anchors with zero positives contribute 0 (PyTorch would NaN).
    mask_sum = jnp.maximum(sums_con[B:], 1e-12)
    mean_log_prob_pos = num_pos * pl.reciprocal(mask_sum, approx=True)  # (B, 1)

    # ---- balanced-softmax cross entropy -----------------------------------
    consts = class_consts_ref[...]                                  # (2, C) f32
    log_weight = consts[0:1, :]                                     # (1, C)
    class_weight = consts[1:2, :]                                   # (1, C)

    adj = sup_logits_ref[...] + log_weight                          # (B, C)
    amax = jnp.max(adj, axis=1, keepdims=True)
    lse = amax + jnp.log(jnp.exp(adj - amax).sum(axis=1, keepdims=True))  # (B, 1)

    cls_ids = lax.broadcasted_iota(jnp.int32, (B, C), 1)
    onehot = lab_anchor_c == cls_ids                                # (B, C) bool

    # Fuse picked-logit and class-weight gathers into one (2B, C) lane sum.
    stacked_ce = jnp.concatenate(
        [jnp.where(onehot, adj, 0.0), jnp.where(onehot, class_weight, 0.0)], axis=0)
    sums_ce = stacked_ce.sum(axis=1, keepdims=True)                 # (2B, 1)
    picked = sums_ce[:B]                                            # (B, 1)
    rew = sums_ce[B:]                                               # (B, 1)

    # Constants -(T/baseT), alpha, 1/B folded into con_scale / inv_batch;
    # single axis-0 sum over the combined per-anchor vector.
    combined = (lse - picked) + con_scale * mean_log_prob_pos * rew  # (B, 1)
    total = combined.sum(axis=0, keepdims=True) * inv_batch          # (1, 1)
    out_ref[0, 0] = total[0, 0]                                      # SMEM scalar


# ---------------------------------------------------------------------------
# Wrapper-side preparation (setup-time and per-step).
# ---------------------------------------------------------------------------

def prepare_feature_queue(features):
    """Persistent lane-dense bf16 (D, N) layout of the contrastive queue.

    In training this buffer should be maintained in-place (only newly enqueued
    columns rewritten each step); it is rebuilt once here for the demo.
    """
    return features.astype(jnp.bfloat16).T


def prepare_class_constants(weight, class_weight):
    """Training-constant (2, C) f32: row 0 = log(weight+1e-9), row 1 = class_weight."""
    C = weight.reshape(-1).shape[0]
    log_weight = jnp.log(weight.reshape(1, C).astype(jnp.float32) + 1e-9)
    cw = class_weight.reshape(1, C).astype(jnp.float32)
    return jnp.concatenate([log_weight, cw], axis=0)


def pack_labels(labels, B, N, C):
    """Single (B+1, P) int32 input: rows 0..B-1 = labels[i] broadcast, row B = labels."""
    P = max(N, C)
    lab = labels.astype(jnp.int32).reshape(-1)
    anchor_rows = jnp.broadcast_to(lab[:B, None], (B, P))
    full_row = jnp.pad(lab, (0, P - N)).reshape(1, P)
    return jnp.concatenate([anchor_rows, full_row], axis=0)


def multitask_loss(anchor_bf16, feat_t_bf16, lab_packed, sup_logits,
                   class_consts, *, temperature, base_temperature, alpha):
    B = anchor_bf16.shape[0]

    kernel = functools.partial(
        multitask_loss_kernel,
        inv_temperature=1.0 / temperature,
        con_scale=-(alpha * temperature / base_temperature),
        inv_batch=1.0 / B)

    vmem = pl.BlockSpec(memory_space=pltpu.MemorySpace.VMEM)
    smem = pl.BlockSpec(memory_space=pltpu.MemorySpace.SMEM)
    out = pl.pallas_call(
        kernel,
        out_shape=jax.ShapeDtypeStruct((1, 1), jnp.float32),
        in_specs=[vmem] * 5,
        out_specs=smem,
    )(anchor_bf16, feat_t_bf16, lab_packed,
      sup_logits.astype(jnp.float32), class_consts)
    return out[0, 0]


# ---------------------------------------------------------------------------
# Pure-JAX reference (mirrors the PyTorch forward).
# ---------------------------------------------------------------------------

def multitask_loss_ref(features, labels, sup_logits, weight, class_weight, *,
                       K, temperature, base_temperature, alpha,
                       mxu_dtype=jnp.float32):
    """mxu_dtype=float32 -> faithful f32 reference; bfloat16 -> mirrors the
    kernel's MXU operand dtypes (bf16 operands, f32 accumulation, scale after)."""
    N = features.shape[0]
    B = N - K
    C = sup_logits.shape[1]
    lab = labels.reshape(-1).astype(jnp.int32)
    feat = features.astype(jnp.float32)

    anchor = feat[:B].astype(mxu_dtype)
    feat_t = feat.T.astype(mxu_dtype)
    adc = jnp.dot(anchor, feat_t, preferred_element_type=jnp.float32) / temperature

    mask = (lab[:B, None] == lab[None, :]).astype(jnp.float32)
    logits = adc - jnp.max(adc, axis=1, keepdims=True)
    logits_mask = 1.0 - jnp.eye(B, N, dtype=jnp.float32)
    mask = mask * logits_mask
    exp_logits = jnp.exp(logits) * logits_mask
    log_prob = logits - jnp.log(exp_logits.sum(1, keepdims=True) + 1e-12)
    mean_log_prob_pos = (mask * log_prob).sum(1) / mask.sum(1)
    rew = class_weight.reshape(-1)[lab[:B]]
    loss = (-(temperature / base_temperature) * mean_log_prob_pos * rew).mean()

    adj = sup_logits.astype(jnp.float32) + jnp.log(weight.reshape(1, C) + 1e-9)
    logz = jax.scipy.special.logsumexp(adj, axis=1)
    ce = (logz - adj[jnp.arange(B), lab[:B]]).mean()
    return ce + alpha * loss


if __name__ == "__main__":
    # Small synthetic shapes consistent with the module's forward.
    B, K, D, C = 8, 120, 32, 128
    N = B + K
    temperature, base_temperature, alpha = 0.5, 0.1, 2.0

    key = jax.random.PRNGKey(0)
    kf, ks, kl = jax.random.split(key, 3)

    features = jax.random.normal(kf, (N, D), jnp.float32)
    features = features / jnp.linalg.norm(features, axis=1, keepdims=True)
    sup_logits = jax.random.normal(ks, (B, C), jnp.float32)
    # Labels drawn from 16 classes so every anchor has positives in the queue.
    labels = jax.random.permutation(kl, jnp.arange(N, dtype=jnp.int32) % 16)

    # Deterministic class statistics (stand-in for cal_weight_for_classes).
    cls_num_list = jnp.arange(C, 0, -1, dtype=jnp.float32) * 10.0 + 5.0
    weight = cls_num_list / cls_num_list.sum()                       # (C,)
    eff_beta = 0.999
    effective_num = (1.0 - jnp.power(eff_beta, cls_num_list)) / (1.0 - eff_beta)
    class_weight = effective_num.sum() / C / effective_num           # (C,)

    # --- one-time setup (training-constant) --------------------------------
    class_consts = prepare_class_constants(weight, class_weight)     # (2, C)
    # --- persistent queue layout (maintained across steps; built once here) -
    feat_t_bf16 = prepare_feature_queue(features)                    # (D, N) bf16
    # --- per-step inputs ----------------------------------------------------
    anchor_bf16 = features[:B].astype(jnp.bfloat16)                  # (B, D) bf16
    lab_packed = pack_labels(labels, B, N, C)                        # (B+1, P) i32

    out = multitask_loss(anchor_bf16, feat_t_bf16, lab_packed, sup_logits,
                         class_consts, temperature=temperature,
                         base_temperature=base_temperature, alpha=alpha)
    out = jax.block_until_ready(out)

    ref_f32 = multitask_loss_ref(features, labels, sup_logits, weight,
                                 class_weight, K=K, temperature=temperature,
                                 base_temperature=base_temperature, alpha=alpha,
                                 mxu_dtype=jnp.float32)
    ref_bf16 = multitask_loss_ref(features, labels, sup_logits, weight,
                                  class_weight, K=K, temperature=temperature,
                                  base_temperature=base_temperature, alpha=alpha,
                                  mxu_dtype=jnp.bfloat16)

    assert jnp.isfinite(out), "kernel produced non-finite loss"
    # Check vs. a reference mirroring the kernel's bf16 MXU operands (the small
    # slack covers the in-kernel approx-reciprocal vs exact division).
    assert abs(float(out) - float(ref_bf16)) < 2e-3 * max(1.0, abs(float(ref_bf16))), (
        f"mismatch vs bf16-mirror: kernel={float(out)} ref={float(ref_bf16)}")
    # Looser check vs. the fully-f32 PyTorch-faithful reference (bf16 operand noise).
    assert abs(float(out) - float(ref_f32)) < 1e-2 * max(1.0, abs(float(ref_f32))), (
        f"mismatch vs f32 ref: kernel={float(out)} ref={float(ref_f32)}")
    print("KERNEL_OK")
</pallas_src>

<mosaic_0001>
module attributes {stable_mosaic.version = 11 : i64} {
  func.func @multitask_loss_kernel(%arg0: memref<8x32xbf16, #tpu.memory_space<vmem>>, %arg1: memref<32x128xbf16, #tpu.memory_space<vmem>>, %arg2: memref<9x128xi32, #tpu.memory_space<vmem>>, %arg3: memref<8x128xf32, #tpu.memory_space<vmem>>, %arg4: memref<2x128xf32, #tpu.memory_space<vmem>>, %arg5: memref<1x1xf32, #tpu.memory_space<smem>>) attributes {dimension_semantics = [], scalar_prefetch = 0 : i64, scratch_operands = 0 : i64, tpu.core_type = #tpu.core_type<tc>} {
    %c0 = arith.constant 0 : index
    %c0_0 = arith.constant 0 : index
    %0 = vector.load %arg0[%c0, %c0_0] : memref<8x32xbf16, #tpu.memory_space<vmem>>, vector<8x32xbf16>
    %c0_1 = arith.constant 0 : index
    %c0_2 = arith.constant 0 : index
    %1 = vector.load %arg1[%c0_1, %c0_2] : memref<32x128xbf16, #tpu.memory_space<vmem>>, vector<32x128xbf16>
    %cst = arith.constant dense<0.000000e+00> : vector<8x128xf32>
    %2 = tpu.matmul %0, %1, %cst {dimension_numbers = #tpu.dot_dimension_numbers<[1], [0], [0], [1], [0, 0, 1, 1], [], []>} : vector<8x32xbf16>, vector<32x128xbf16>, vector<8x128xf32> -> vector<8x128xf32>
    %cst_3 = arith.constant 2.000000e+00 : f32
    %3 = vector.broadcast %cst_3 : f32 to vector<8x128xf32>
    %4 = arith.mulf %2, %3 : vector<8x128xf32>
    %c0_4 = arith.constant 0 : index
    %c0_5 = arith.constant 0 : index
    %5 = vector.load %arg2[%c0_4, %c0_5] : memref<9x128xi32, #tpu.memory_space<vmem>>, vector<9x128xi32>
    %6 = vector.extract_strided_slice %5 {offsets = [0, 0], sizes = [8, 128], strides = [1, 1]} : vector<9x128xi32> to vector<8x128xi32>
    %7 = vector.extract_strided_slice %5 {offsets = [8, 0], sizes = [1, 128], strides = [1, 1]} : vector<9x128xi32> to vector<1x128xi32>
    %8 = vector.extract_strided_slice %5 {offsets = [0, 0], sizes = [8, 128], strides = [1, 1]} : vector<9x128xi32> to vector<8x128xi32>
    %9 = tpu.iota {dimensions = array<i32: 0>} : vector<8x128xi32>
    %10 = tpu.iota {dimensions = array<i32: 1>} : vector<8x128xi32>
    %11 = arith.cmpi ne, %9, %10 : vector<8x128xi32>
    %12 = vector.broadcast %7 : vector<1x128xi32> to vector<8x128xi32>
    %13 = arith.cmpi eq, %6, %12 : vector<8x128xi32>
    %14 = arith.andi %13, %11 : vector<8x128xi1>
    %cst_6 = arith.constant dense<0xFF800000> : vector<8xf32>
    %15 = vector.multi_reduction <maximumf>, %4, %cst_6 [1] : vector<8x128xf32> to vector<8xf32>
    %16 = vector.shape_cast %15 : vector<8xf32> to vector<8x1xf32>
    %17 = vector.broadcast %16 : vector<8x1xf32> to vector<8x128xf32>
    %18 = arith.subf %4, %17 : vector<8x128xf32>
    %19 = math.exp %18 : vector<8x128xf32>
    %cst_7 = arith.constant 0.000000e+00 : f32
    %20 = vector.broadcast %cst_7 : f32 to vector<8x128xf32>
    %21 = arith.select %11, %19, %20 : vector<8x128xi1>, vector<8x128xf32>
    %cst_8 = arith.constant dense<0.000000e+00> : vector<8xf32>
    %22 = vector.multi_reduction <add>, %21, %cst_8 [1] : vector<8x128xf32> to vector<8xf32>
    %23 = vector.shape_cast %22 : vector<8xf32> to vector<8x1xf32>
    %cst_9 = arith.constant 9.99999996E-13 : f32
    %24 = vector.broadcast %cst_9 : f32 to vector<8x1xf32>
    %25 = arith.addf %23, %24 : vector<8x1xf32>
    %26 = math.log %25 : vector<8x1xf32>
    %27 = vector.broadcast %26 : vector<8x1xf32> to vector<8x128xf32>
    %28 = arith.subf %18, %27 : vector<8x128xf32>
    %cst_10 = arith.constant 0.000000e+00 : f32
    %29 = vector.broadcast %cst_10 : f32 to vector<8x128xf32>
    %30 = arith.select %14, %28, %29 : vector<8x128xi1>, vector<8x128xf32>
    %cst_11 = arith.constant 1.000000e+00 : f32
    %cst_12 = arith.constant 0.000000e+00 : f32
    %31 = vector.broadcast %cst_11 : f32 to vector<8x128xf32>
    %32 = vector.broadcast %cst_12 : f32 to vector<8x128xf32>
    %33 = arith.select %14, %31, %32 : vector<8x128xi1>, vector<8x128xf32>
    %34 = tpu.concatenate %30, %33 in 0 : vector<8x128xf32>, vector<8x128xf32> -> vector<16x128xf32>
    %cst_13 = arith.constant dense<0.000000e+00> : vector<16xf32>
    %35 = vector.multi_reduction <add>, %34, %cst_13 [1] : vector<16x128xf32> to vector<16xf32>
    %36 = vector.shape_cast %35 : vector<16xf32> to vector<16x1xf32>
    %37 = vector.extract_strided_slice %36 {offsets = [0, 0], sizes = [8, 1], strides = [1, 1]} : vector<16x1xf32> to vector<8x1xf32>
    %38 = vector.extract_strided_slice %36 {offsets = [8, 0], sizes = [8, 1], strides = [1, 1]} : vector<16x1xf32> to vector<8x1xf32>
    %cst_14 = arith.constant 9.99999996E-13 : f32
    %39 = vector.broadcast %cst_14 : f32 to vector<8x1xf32>
    %40 = arith.maximumf %38, %39 : vector<8x1xf32>
    %41 = tpu.reciprocal %40 {approx = true} : vector<8x1xf32> -> vector<8x1xf32>
    %42 = arith.mulf %37, %41 : vector<8x1xf32>
    %c0_15 = arith.constant 0 : index
    %c0_16 = arith.constant 0 : index
    %43 = vector.load %arg4[%c0_15, %c0_16] : memref<2x128xf32, #tpu.memory_space<vmem>>, vector<2x128xf32>
    %44 = vector.extract_strided_slice %43 {offsets = [0, 0], sizes = [1, 128], strides = [1, 1]} : vector<2x128xf32> to vector<1x128xf32>
    %45 = vector.extract_strided_slice %43 {offsets = [1, 0], sizes = [1, 128], strides = [1, 1]} : vector<2x128xf32> to vector<1x128xf32>
    %c0_17 = arith.constant 0 : index
    %c0_18 = arith.constant 0 : index
    %46 = vector.load %arg3[%c0_17, %c0_18] : memref<8x128xf32, #tpu.memory_space<vmem>>, vector<8x128xf32>
    %47 = vector.broadcast %44 : vector<1x128xf32> to vector<8x128xf32>
    %48 = arith.addf %46, %47 : vector<8x128xf32>
    %cst_19 = arith.constant dense<0xFF800000> : vector<8xf32>
    %49 = vector.multi_reduction <maximumf>, %48, %cst_19 [1] : vector<8x128xf32> to vector<8xf32>
    %50 = vector.shape_cast %49 : vector<8xf32> to vector<8x1xf32>
    %51 = vector.broadcast %50 : vector<8x1xf32> to vector<8x128xf32>
    %52 = arith.subf %48, %51 : vector<8x128xf32>
    %53 = math.exp %52 : vector<8x128xf32>
    %cst_20 = arith.constant dense<0.000000e+00> : vector<8xf32>
    %54 = vector.multi_reduction <add>, %53, %cst_20 [1] : vector<8x128xf32> to vector<8xf32>
    %55 = vector.shape_cast %54 : vector<8xf32> to vector<8x1xf32>
    %56 = math.log %55 : vector<8x1xf32>
    %57 = arith.addf %50, %56 : vector<8x1xf32>
    %58 = tpu.iota {dimensions = array<i32: 1>} : vector<8x128xi32>
    %59 = arith.cmpi eq, %8, %58 : vector<8x128xi32>
    %cst_21 = arith.constant 0.000000e+00 : f32
    %60 = vector.broadcast %cst_21 : f32 to vector<8x128xf32>
    %61 = arith.select %59, %48, %60 : vector<8x128xi1>, vector<8x128xf32>
    %cst_22 = arith.constant 0.000000e+00 : f32
    %62 = vector.shape_cast %45 : vector<1x128xf32> to vector<1x128xf32>
    %63 = vector.broadcast %62 : vector<1x128xf32> to vector<8x128xf32>
    %64 = vector.broadcast %cst_22 : f32 to vector<8x128xf32>
    %65 = arith.select %59, %63, %64 : vector<8x128xi1>, vector<8x128xf32>
    %66 = tpu.concatenate %61, %65 in 0 : vector<8x128xf32>, vector<8x128xf32> -> vector<16x128xf32>
    %cst_23 = arith.constant dense<0.000000e+00> : vector<16xf32>
    %67 = vector.multi_reduction <add>, %66, %cst_23 [1] : vector<16x128xf32> to vector<16xf32>
    %68 = vector.shape_cast %67 : vector<16xf32> to vector<16x1xf32>
    %69 = vector.extract_strided_slice %68 {offsets = [0, 0], sizes = [8, 1], strides = [1, 1]} : vector<16x1xf32> to vector<8x1xf32>
    %70 = vector.extract_strided_slice %68 {offsets = [8, 0], sizes = [8, 1], strides = [1, 1]} : vector<16x1xf32> to vector<8x1xf32>
    %71 = arith.subf %57, %69 : vector<8x1xf32>
    %cst_24 = arith.constant -1.000000e+01 : f32
    %72 = vector.broadcast %cst_24 : f32 to vector<8x1xf32>
    %73 = arith.mulf %72, %42 : vector<8x1xf32>
    %74 = arith.mulf %73, %70 : vector<8x1xf32>
    %75 = arith.addf %71, %74 : vector<8x1xf32>
    %cst_25 = arith.constant dense<0.000000e+00> : vector<1xf32>
    %76 = vector.multi_reduction <add>, %75, %cst_25 [0] : vector<8x1xf32> to vector<1xf32>
    %77 = vector.shape_cast %76 : vector<1xf32> to vector<1x1xf32>
    %cst_26 = arith.constant 1.250000e-01 : f32
    %78 = vector.broadcast %cst_26 : f32 to vector<1x1xf32>
    %79 = arith.mulf %77, %78 : vector<1x1xf32>
    %80 = vector.extract %79[0, 0] : f32 from vector<1x1xf32>
    %c0_27 = arith.constant 0 : index
    %c0_28 = arith.constant 0 : index
    %81 = memref.load %arg5[%c0_27, %c0_28] : memref<1x1xf32, #tpu.memory_space<smem>>
    memref.store %80, %arg5[%c0_27, %c0_28] : memref<1x1xf32, #tpu.memory_space<smem>>
    return
  }
}

</mosaic_0001>

<llo_original>
// kernel: tpu_custom_call.1
$region0: #{tpu_custom_call.1}
  #allocation0 [shape = 'u32[]', space=smem, size = 0x4, offset = 0x4, fixed_abs, tag = 'smem constant byte address 0x4 - core index']
  #allocation1 [shape = 'u32[144,128]{1,0:T(1,128)}', space=vmem, size = 0x12000, scoped, tag = 'internal scratch']
  %s0 = inlined_call_operand.hbm [shape: bf16[8,32], index: 0, kind: input, shape index: {}]
  %s1 = inlined_call_operand.hbm [shape: bf16[32,128], index: 1, kind: input, shape index: {}]
  %s2 = inlined_call_operand.hbm [shape: s32[9,128], index: 2, kind: input, shape index: {}]
  %s3 = inlined_call_operand.hbm [shape: f32[8,128], index: 3, kind: input, shape index: {}]
  %s4 = inlined_call_operand.vmem [shape: f32[2,128], index: 4, kind: input, shape index: {}]
  %s5 = inlined_call_operand.hbm [shape: f32[1,1], index: 5, kind: output, shape index: {}]
  %s6 = sld [smem:[#allocation0]]
  $region46: #{tpu_custom_call.1} parent=0
    _
  %s8 = ssub.s32 1, %s6
  %s9 = scalar_select 0, %s8, %s6
  $region1: #{tpu_custom_call.1} parent=0
    #allocation2 [shape = 'u8[2048]{0}', space=vmem, size = 0x800, scoped, tag = 'input window, operand 0, single buffered']
    #allocation3 [shape = 's32[1]{0}', space=sflag, size = 0x4, scoped, tag = 'scoped memory for tpu_custom_call.1']
    #allocation4 [shape = 's32[1]{0}', space=sflag, size = 0x4, scoped, tag = 'scoped memory for tpu_custom_call.1']
    #allocation5 [shape = 'u8[8192]{0}', space=vmem, size = 0x2000, scoped, tag = 'input window, operand 1, single buffered']
    #allocation6 [shape = 's32[1]{0}', space=sflag, size = 0x4, scoped, tag = 'scoped memory for tpu_custom_call.1']
    #allocation7 [shape = 'u8[8192]{0}', space=vmem, size = 0x2000, scoped, tag = 'input window, operand 2, single buffered']
    #allocation8 [shape = 'u8[4096]{0}', space=vmem, size = 0x1000, scoped, tag = 'input window, operand 3, single buffered']
    #allocation9 [shape = 's32[1]{0}', space=sflag, size = 0x4, scoped, tag = 'scoped memory for tpu_custom_call.1']
    #allocation10 [shape = 'u8[512]{0}', space=smem, size = 0x200, scoped, tag = 'output window, operand 0, single buffered']
    %10 = vsyncpa [#allocation3], 0
    %11 = vsyncpa [#allocation6], 0
    %12 = vsyncpa [#allocation9], 0
    %13 = vsyncpa [#allocation4], 0
    // Predicated region
    $region2: #{tpu_custom_call.1} parent=1 // pred_check
      _
    $region3: #{tpu_custom_call.1} parent=1 // pred_check_branch
      %15 = sbr.rel (0) target = $region5
    $region4: #{tpu_custom_call.1} parent=1 // pred_region
      %s17 = ssub.s32 64, 64
      %18 = vsyncadd [#allocation3], %s17
      %s20 = sshll.u32 [#allocation2], 4
      %s21 = int_to_ptr.vmem [resolvable:$true] %s20
      %23 = dma.hbm_to_vmem [thread:$0]  %s0, 64, %s21, [#allocation3]
    $region5: #{tpu_custom_call.1} parent=1 // pred_fallthru
      _
    // Predicated region
    $region6: #{tpu_custom_call.1} parent=1 // pred_check
      _
    $region7: #{tpu_custom_call.1} parent=1 // pred_check_branch
      %25 = sbr.rel (0) target = $region9
    $region8: #{tpu_custom_call.1} parent=1 // pred_region
      %s27 = ssub.s32 256, 256
      %28 = vsyncadd [#allocation6], %s27
      %s29 = sshll.u32 [#allocation5], 4
      %s30 = int_to_ptr.vmem [resolvable:$true] %s29
      %35 = dma.hbm_to_vmem [thread:$0]  %s1, 256, %s30, [#allocation6], 64, 64, 4
    $region9: #{tpu_custom_call.1} parent=1 // pred_fallthru
      _
    // Predicated region
    $region10: #{tpu_custom_call.1} parent=1 // pred_check
      _
    $region11: #{tpu_custom_call.1} parent=1 // pred_check_branch
      %37 = sbr.rel (0) target = $region13
    $region12: #{tpu_custom_call.1} parent=1 // pred_region
      %s39 = ssub.s32 256, 256
      %40 = vsyncadd [#allocation6], %s39
      %s41 = sshll.u32 [#allocation7], 4
      %s42 = int_to_ptr.vmem [resolvable:$true] %s41
      %47 = dma.hbm_to_vmem [thread:$0]  %s2, 256, %s42, [#allocation6], 128, 128, 8
    $region13: #{tpu_custom_call.1} parent=1 // pred_fallthru
      _
    // Predicated region
    $region14: #{tpu_custom_call.1} parent=1 // pred_check
      _
    $region15: #{tpu_custom_call.1} parent=1 // pred_check_branch
      %49 = sbr.rel (0) target = $region17
    $region16: #{tpu_custom_call.1} parent=1 // pred_region
      %s51 = ssub.s32 128, 128
      %52 = vsyncadd [#allocation9], %s51
      %s54 = sshll.u32 [#allocation8], 4
      %s55 = int_to_ptr.vmem [resolvable:$true] %s54
      %57 = dma.hbm_to_vmem [thread:$0]  %s3, 128, %s55, [#allocation9]
    $region17: #{tpu_custom_call.1} parent=1 // pred_fallthru
      _
    // Predicated region
    $region18: #{tpu_custom_call.1} parent=1 // pred_check
      _
    $region19: #{tpu_custom_call.1} parent=1 // pred_check_branch
      %59 = sbr.rel (0) target = $region21
    $region20: #{tpu_custom_call.1} parent=1 // pred_region
      _
    $region21: #{tpu_custom_call.1} parent=1 // pred_fallthru
      _
    // Predicated region
    $region22: #{tpu_custom_call.1} parent=1 // pred_check
      _
    $region23: #{tpu_custom_call.1} parent=1 // pred_check_branch
      %61 = sbr.rel (0) target = $region25
    $region24: #{tpu_custom_call.1} parent=1 // pred_region
      %62 = dma.done [#allocation3], 64
    $region25: #{tpu_custom_call.1} parent=1 // pred_fallthru
      _
    // Predicated region
    $region26: #{tpu_custom_call.1} parent=1 // pred_check
      _
    $region27: #{tpu_custom_call.1} parent=1 // pred_check_branch
      %64 = sbr.rel (0) target = $region29
    $region28: #{tpu_custom_call.1} parent=1 // pred_region
      %65 = dma.done [#allocation6], 256
    $region29: #{tpu_custom_call.1} parent=1 // pred_fallthru
      _
    // Predicated region
    $region30: #{tpu_custom_call.1} parent=1 // pred_check
      _
    $region31: #{tpu_custom_call.1} parent=1 // pred_check_branch
      %67 = sbr.rel (0) target = $region33
    $region32: #{tpu_custom_call.1} parent=1 // pred_region
      %68 = dma.done [#allocation6], 256
    $region33: #{tpu_custom_call.1} parent=1 // pred_fallthru
      _
    // Predicated region
    $region34: #{tpu_custom_call.1} parent=1 // pred_check
      _
    $region35: #{tpu_custom_call.1} parent=1 // pred_check_branch
      %70 = sbr.rel (0) target = $region37
    $region36: #{tpu_custom_call.1} parent=1 // pred_region
      %71 = dma.done [#allocation9], 128
    $region37: #{tpu_custom_call.1} parent=1 // pred_fallthru
      _
    %v73 = vld [vmem:[#allocation2] sm:$0xf]
    %v74 = vld [vmem:[#allocation5] sm:$0xf]
    %v75 = vld [vmem:[#allocation5 + $0x4] sm:$0xf]
    %v76 = vld [vmem:[#allocation5 + $0x8] sm:$0xf]
    %v77 = vld [vmem:[#allocation5 + $0xc] sm:$0xf]
    %v82 = vunpack.c.l.b16 %v74
    %v83 = vunpack.c.l.b16 %v75
    %v84 = vunpack.c.l.b16 %v76
    %v85 = vunpack.c.l.b16 %v77
    %v86 = vpack.c.b16 %v83, %v82
    %v87 = vpack.c.b16 %v85, %v84
    %vm90 = vcmask 261120
    %v92 = vsel %vm90, %v73, 0
    %94 = vmatprep.subr.bf16.mxu0 0
    %95 = vmatpush1.bf16.msra.mxu0 0
    %96 = vmatprep.subr.bf16.mxu0 0
    %97 = vmatpush1.bf16.msra.mxu0 0
    %98 = vmatprep.subr.bf16.mxu0 0
    %99 = vmatpush1.bf16.msra.mxu0 0
    %100 = vmatprep.subr.bf16.mxu0 0
    %101 = vmatpush1.bf16.msra.mxu0 0
    %102 = vmatprep.subr.bf16.mxu0 0
    %103 = vmatpush1.bf16.msra.mxu0 0
    %104 = vmatprep.subr.bf16.mxu0 0
    %105 = vmatpush1.bf16.msra.mxu0 0
    %106 = vmatprep.subr.bf16.mxu0 0
    %107 = vmatpush1.bf16.msra.mxu0 %v87
    %108 = vmatprep.subr.bf16.mxu0 0
    %109 = vmatpush1.bf16.msra.mxu0 %v86
    %110 = vmatprep.subr.bf16.mxu0 0
    %111 = vmatpush2.bf16.msra.mxu0 0
    %112 = vmatprep.subr.bf16.mxu0 0
    %113 = vmatpush2.bf16.msra.mxu0 0
    %114 = vmatprep.subr.bf16.mxu0 0
    %115 = vmatpush2.bf16.msra.mxu0 0
    %116 = vmatprep.subr.bf16.mxu0 0
    %117 = vmatpush2.bf16.msra.mxu0 0
    %118 = vmatprep.subr.bf16.mxu0 0
    %119 = vmatpush2.bf16.msra.mxu0 0
    %120 = vmatprep.subr.bf16.mxu0 0
    %121 = vmatpush2.bf16.msra.mxu0 0
    %122 = vmatprep.subr.bf16.mxu0 0
    %123 = vmatpush2.bf16.msra.mxu0 0
    %124 = vmatprep.subr.bf16.mxu0 0
    %125 = vmatpush2.bf16.msra.mxu0 0
    %126 = vmatprep.mubr.bf16.mxu0 0
    %127 = vmatmul.mubr.bf16.gmra.mxu0 %v92
    %v128 = vpop.f32.mrf.mxu0
    %v129 = vadd.f32 0.0, %v128
    %v130 = vpop.f32.mrf.mxu0
    %v131 = vpop.f32.mrf.mxu0
    %v132 = vpop.f32.mrf.mxu0
    %133 = vdwg.mxu0
    %v134 = vmul.f32 %v129, 2.0
    %v135 = vld [vmem:[#allocation7] sm:$0xff]
    %v136 = vld [vmem:[#allocation7 + $0x8] sm:$0x1]
    %v137 = vlaneseq
    %v138 = vshrl.u32 %v137, 7
    %v139 = vlaneseq
    %v140 = vand.u32 %v139, 127
    %vm141 = vcmp.ne.s32.totalorder %v138, %v140
    %v142 = vlaneseq
    %v143 = vshrl.u32 %v142, 7
    %v144 = vsub.s32 0, %v143
    %v145 = vrot.slane %v136, %v144
    %vm146 = vcmp.eq.s32.totalorder %v135, %v145
    %vm147 = vmand %vm146, %vm141
    %148 = vmax.xlane.f32.xlu0 %v134
    %v149 = vpop.xlane.xlu0 %148
    %v150 = vsub.f32 %v134, %v149
    %v151 = vmul.f32 %v150, 1.442695
    %v152 = vpow.pop %v151
    %v153 = vsel %vm141, %v152, 0.0
    %154 = vadd.xlane.f32.xlu0 %v153
    %v155 = vpop.xlane.xlu0 %154
    %v156 = vadd.f32 %v155, 1e-12
    %v157 = vlog2.pop %v156
    %v158 = vmul.f32 %v157, 0.6931472
    %v159 = vsub.f32 %v150, %v158
    %v160 = vsel %vm147, %v159, 0.0
    %v161 = vsel %vm147, 1.0, 0.0
    %162 = vadd.xlane.f32.xlu0 %v160
    %v163 = vpop.xlane.xlu0 %162
    %164 = vadd.xlane.f32.xlu0 %v161
    %v165 = vpop.xlane.xlu0 %164
    %v166 = vmax.f32 %v165, 1e-12
    %v167 = vrcp.pop %v166
    %v168 = vmul.f32 %v163, %v167
    %v169 = vld [vmem:[%s4] sm:$0x3]
    %v170 = vld [vmem:[#allocation8] sm:$0xff]
    %v171 = vlaneseq
    %v172 = vshrl.u32 %v171, 7
    %v173 = vsub.s32 0, %v172
    %v174 = vrot.slane %v169, %v173
    %v175 = vadd.f32 %v170, %v174
    %176 = vmax.xlane.f32.xlu0 %v175
    %v177 = vpop.xlane.xlu0 %176
    %v178 = vsub.f32 %v175, %v177
    %v179 = vmul.f32 %v178, 1.442695
    %v180 = vpow.pop %v179
    %181 = vadd.xlane.f32.xlu0 %v180
    %v182 = vpop.xlane.xlu0 %181
    %v183 = vlog2.pop %v182
    %v184 = vmul.f32 %v183, 0.6931472
    %v185 = vadd.f32 %v177, %v184
    %vm186 = vcmp.eq.s32.totalorder %v135, %v140
    %v187 = vsel %vm186, %v175, 0.0
    %v188 = vlaneseq
    %v189 = vshrl.u32 %v188, 7
    %v190 = vsub.s32 1, %v189
    %v191 = vrot.slane %v169, %v190
    %v192 = vsel %vm186, %v191, 0.0
    %193 = vadd.xlane.f32.xlu0 %v187
    %v194 = vpop.xlane.xlu0 %193
    %195 = vadd.xlane.f32.xlu0 %v192
    %v196 = vpop.xlane.xlu0 %195
    %v197 = vsub.f32 %v185, %v194
    %v198 = vmul.f32 %v168, -10.0
    %v199 = vmul.f32 %v198, %v196
    %v200 = vadd.f32 %v197, %v199
    %v201 = vrot.slane %v200, 4
    %v202 = vadd.f32 %v200, %v201
    %v203 = vrot.slane %v202, 2
    %v204 = vadd.f32 %v202, %v203
    %v205 = vrot.slane %v204, 1
    %v206 = vadd.f32 %v204, %v205
    %v207 = vmul.f32 %v206, 0.125
    %s208 = vtos %v207
    %s209 = scalar_lea.smem [#allocation10], 0
    %210 = sst [smem:[%s209]] %s208
    // Predicated region
    $region38: #{tpu_custom_call.1} parent=1 // pred_check
      _
    $region39: #{tpu_custom_call.1} parent=1 // pred_check_branch
      %212 = sbr.rel (0) target = $region41
    $region40: #{tpu_custom_call.1} parent=1 // pred_region
      %s214 = ssub.s32 16, 16
      %215 = vsyncadd [#allocation4], %s214
      %218 = dma.smem_to_hbm [#allocation10], 16, %s5, [#allocation4]
    $region41: #{tpu_custom_call.1} parent=1 // pred_fallthru
      _
    // Predicated region
    $region42: #{tpu_custom_call.1} parent=1 // pred_check
      _
    $region43: #{tpu_custom_call.1} parent=1 // pred_check_branch
      %220 = sbr.rel (0) target = $region45
    $region44: #{tpu_custom_call.1} parent=1 // pred_region
      %221 = dma.done [#allocation4], 16
    $region45: #{tpu_custom_call.1} parent=1 // pred_fallthru
      _
    %222 = sfence
    %223 = vsyncpa [#allocation3], 1
    %224 = vsyncpa [#allocation6], 1
    %225 = vsyncpa [#allocation9], 1
    %226 = vsyncpa [#allocation4], 1

</llo_original>
